<compile_context>
chip_gen: v7x
topology: tpu7x:2x2x1
jax: 0.10.0
libtpu: 0.0.40
codegen_flags: <defaults>
</compile_context>

<pallas_src>
import functools
import math

import jax
import jax.numpy as jnp
from jax import lax
from jax.experimental import pallas as pl
from jax.experimental.pallas import tpu as pltpu

TILE = 128        # MXU-friendly everywhere (v5e MXU is 4x128^2); raise to 256 on v6e/v7x.
_NEG_BIG = -1e30  # finite "minus infinity" (avoids inf-inf NaNs in online softmax)


def _ceil_to(v, m):
    return ((v + m - 1) // m) * m


def _pad2(x, rows, cols):
    r, c = x.shape
    if r == rows and c == cols:
        return x
    return jnp.pad(x, ((0, rows - r), (0, cols - c)))


# ----------------------------------------------------------------------------
# Pallas kernel 1: tiled  out = act(x @ w [+ b])  (optionally x @ w.T).
# bf16 inputs -> MXU, f32 accumulation in VMEM scratch, epilogue at last K step.
# Used for: global add-pool (P @ H), proj-head / FF linears, l_enc @ g_enc.T.
# ----------------------------------------------------------------------------
def _make_matmul_kernel(has_bias, activation, transpose_rhs):
    def kernel(*refs):
        if has_bias:
            x_ref, w_ref, b_ref, o_ref, acc_ref = refs
        else:
            x_ref, w_ref, o_ref, acc_ref = refs
            b_ref = None

        @pl.when(pl.program_id(2) == 0)
        def _init():
            acc_ref[...] = jnp.zeros_like(acc_ref)

        if transpose_rhs:
            acc_ref[...] += lax.dot_general(
                x_ref[...], w_ref[...], (((1,), (1,)), ((), ())),
                preferred_element_type=jnp.float32)
        else:
            acc_ref[...] += jnp.dot(x_ref[...], w_ref[...],
                                    preferred_element_type=jnp.float32)

        @pl.when(pl.program_id(2) == pl.num_programs(2) - 1)
        def _finalize():
            y = acc_ref[...]
            if b_ref is not None:
                y = y + b_ref[...]
            if activation == "relu":
                y = jnp.maximum(y, 0.0)
            o_ref[...] = y.astype(o_ref.dtype)

    return kernel


def pallas_matmul(x, w, b=None, activation=None, transpose_rhs=False, tile=TILE):
    m, k = x.shape
    if transpose_rhs:
        n, k2 = w.shape
    else:
        k2, n = w.shape
    assert k == k2
    mp, kp, np_ = _ceil_to(m, tile), _ceil_to(k, tile), _ceil_to(n, tile)

    xp = _pad2(x.astype(jnp.float32), mp, kp).astype(jnp.bfloat16)
    if transpose_rhs:
        wp = _pad2(w.astype(jnp.float32), np_, kp).astype(jnp.bfloat16)
        w_spec = pl.BlockSpec((tile, tile), lambda i, j, kk: (j, kk))
    else:
        wp = _pad2(w.astype(jnp.float32), kp, np_).astype(jnp.bfloat16)
        w_spec = pl.BlockSpec((tile, tile), lambda i, j, kk: (kk, j))

    args = [xp, wp]
    in_specs = [pl.BlockSpec((tile, tile), lambda i, j, kk: (i, kk)), w_spec]
    if b is not None:
        bp = _pad2(jnp.reshape(b, (1, n)).astype(jnp.float32), 1, np_)
        args.append(bp)
        in_specs.append(pl.BlockSpec((1, tile), lambda i, j, kk: (0, j)))

    out = pl.pallas_call(
        _make_matmul_kernel(b is not None, activation, transpose_rhs),
        out_shape=jax.ShapeDtypeStruct((mp, np_), jnp.float32),
        grid=(mp // tile, np_ // tile, kp // tile),
        in_specs=in_specs,
        out_specs=pl.BlockSpec((tile, tile), lambda i, j, kk: (i, j)),
        scratch_shapes=[pltpu.VMEM((tile, tile), jnp.float32)],
        compiler_params=pltpu.CompilerParams(
            dimension_semantics=("parallel", "parallel", "arbitrary")),
    )(*args)
    return out[:m, :n]


# ----------------------------------------------------------------------------
# Pallas kernel 2: fused GIN layer
#   out = relu( relu( (A_hat @ H) @ W1 + b1 ) @ W2 + b2 )
# The (tm, F) aggregation accumulator stays in VMEM across the K reduction;
# the 2-layer MLP runs in the epilogue of the last K step (no HBM round-trip
# for the aggregation).
# ----------------------------------------------------------------------------
def _gin_layer_kernel(a_ref, h_ref, w1_ref, b1_ref, w2_ref, b2_ref, o_ref, acc_ref):
    @pl.when(pl.program_id(1) == 0)
    def _init():
        acc_ref[...] = jnp.zeros_like(acc_ref)

    acc_ref[...] += jnp.dot(a_ref[...], h_ref[...],
                            preferred_element_type=jnp.float32)

    @pl.when(pl.program_id(1) == pl.num_programs(1) - 1)
    def _mlp():
        z = jnp.dot(acc_ref[...].astype(jnp.bfloat16), w1_ref[...],
                    preferred_element_type=jnp.float32) + b1_ref[...]
        z = jnp.maximum(z, 0.0)
        z = jnp.dot(z.astype(jnp.bfloat16), w2_ref[...],
                    preferred_element_type=jnp.float32) + b2_ref[...]
        o_ref[...] = jnp.maximum(z, 0.0)


def pallas_gin_layer(a_hat, h, w1, b1, w2, b2, tile=TILE):
    n = a_hat.shape[0]
    f = h.shape[1]
    hd = w1.shape[1]
    npad = _ceil_to(n, tile)
    fpad = _ceil_to(f, 128)
    hpad = _ceil_to(hd, 128)

    ap = _pad2(a_hat.astype(jnp.float32), npad, npad).astype(jnp.bfloat16)
    hp = _pad2(h.astype(jnp.float32), npad, fpad).astype(jnp.bfloat16)
    w1p = _pad2(w1.astype(jnp.float32), fpad, hpad).astype(jnp.bfloat16)
    w2p = _pad2(w2.astype(jnp.float32), hpad, hpad).astype(jnp.bfloat16)
    b1p = _pad2(jnp.reshape(b1, (1, hd)).astype(jnp.float32), 1, hpad)
    b2p = _pad2(jnp.reshape(b2, (1, hd)).astype(jnp.float32), 1, hpad)

    out = pl.pallas_call(
        _gin_layer_kernel,
        out_shape=jax.ShapeDtypeStruct((npad, hpad), jnp.float32),
        grid=(npad // tile, npad // tile),
        in_specs=[
            pl.BlockSpec((tile, tile), lambda i, k: (i, k)),    # A_hat tile
            pl.BlockSpec((tile, fpad), lambda i, k: (k, 0)),    # H tile
            pl.BlockSpec((fpad, hpad), lambda i, k: (0, 0)),    # W1 (resident)
            pl.BlockSpec((1, hpad), lambda i, k: (0, 0)),       # b1
            pl.BlockSpec((hpad, hpad), lambda i, k: (0, 0)),    # W2 (resident)
            pl.BlockSpec((1, hpad), lambda i, k: (0, 0)),       # b2
        ],
        out_specs=pl.BlockSpec((tile, hpad), lambda i, k: (i, 0)),
        scratch_shapes=[pltpu.VMEM((tile, fpad), jnp.float32)],
        compiler_params=pltpu.CompilerParams(
            dimension_semantics=("parallel", "arbitrary")),
    )(ap, hp, w1p, b1p, w2p, b2p)
    return out[:n, :hd]


# ----------------------------------------------------------------------------
# Pallas kernel 3: blocked NT-Xent (SimCLR) loss, flash-style online logsumexp.
# reps = concat([z_j, z_i]) (2B, D), L2-normalized -> cosine sims.
# per-row: logsumexp_{j != i}(S_ij / T) - S_{i, pair(i)} / T ;  loss = mean.
# Grid: (row blocks [parallel], col blocks [arbitrary/reduction]).
# ----------------------------------------------------------------------------
def _nt_xent_kernel(rows_ref, cols_ref, out_ref, m_sc, l_sc, p_sc, *,
                    n, batch_size, inv_temp, tb):
    i = pl.program_id(0)
    j = pl.program_id(1)

    @pl.when(j == 0)
    def _init():
        m_sc[...] = jnp.full_like(m_sc, _NEG_BIG)
        l_sc[...] = jnp.zeros_like(l_sc)
        p_sc[...] = jnp.zeros_like(p_sc)

    sim = lax.dot_general(rows_ref[...], cols_ref[...],
                          (((1,), (1,)), ((), ())),
                          preferred_element_type=jnp.float32) * jnp.float32(inv_temp)

    row = i * tb + lax.broadcasted_iota(jnp.int32, (tb, tb), 0)
    col = j * tb + lax.broadcasted_iota(jnp.int32, (tb, tb), 1)
    valid = (col < n) & (row != col)                    # drop self & padded columns
    sim_m = jnp.where(valid, sim, jnp.float32(_NEG_BIG))

    pos_mask = (col == jnp.remainder(row + batch_size, n)) & (col < n)
    p_sc[...] += jnp.sum(jnp.where(pos_mask, sim, 0.0), axis=-1, keepdims=True)

    m_prev = m_sc[...]
    m_new = jnp.maximum(m_prev, jnp.max(sim_m, axis=-1, keepdims=True))
    l_sc[...] = l_sc[...] * jnp.exp(m_prev - m_new) + jnp.sum(
        jnp.exp(sim_m - m_new), axis=-1, keepdims=True)
    m_sc[...] = m_new

    @pl.when(j == pl.num_programs(1) - 1)
    def _finalize():
        lse = m_sc[...] + jnp.log(l_sc[...])
        row1 = i * tb + lax.broadcasted_iota(jnp.int32, (tb, 1), 0)
        out_ref[...] = jnp.where(row1 < n, lse - p_sc[...], 0.0)


def pallas_nt_xent(z_i, z_j, temperature, tile=TILE):
    b, d = z_i.shape
    reps = jnp.concatenate([z_j, z_i], axis=0)                # matches reference order
    reps = reps / jnp.maximum(jnp.linalg.norm(reps, axis=1, keepdims=True), 1e-12)
    n = 2 * b
    npad = _ceil_to(n, tile)
    dpad = _ceil_to(d, 128)
    reps_p = _pad2(reps.astype(jnp.float32), npad, dpad).astype(jnp.bfloat16)

    kern = functools.partial(_nt_xent_kernel, n=n, batch_size=b,
                             inv_temp=float(1.0 / temperature), tb=tile)
    per_row = pl.pallas_call(
        kern,
        out_shape=jax.ShapeDtypeStruct((npad, 1), jnp.float32),
        grid=(npad // tile, npad // tile),
        in_specs=[pl.BlockSpec((tile, dpad), lambda i, j: (i, 0)),
                  pl.BlockSpec((tile, dpad), lambda i, j: (j, 0))],
        out_specs=pl.BlockSpec((tile, 1), lambda i, j: (i, 0)),
        scratch_shapes=[pltpu.VMEM((tile, 1), jnp.float32)] * 3,
        compiler_params=pltpu.CompilerParams(
            dimension_semantics=("parallel", "arbitrary")),
    )(reps_p, reps_p)
    return jnp.sum(per_row) / jnp.float32(n)


# ----------------------------------------------------------------------------
# Plain-JAX glue (parameter init, BN stats, mixup randomness, loss plumbing).
# ----------------------------------------------------------------------------
def xavier_uniform(key, fan_in, fan_out):
    limit = math.sqrt(6.0 / (fan_in + fan_out))
    return jax.random.uniform(key, (fan_in, fan_out), jnp.float32, -limit, limit)


def linear_params(key, fan_in, fan_out):
    return {"w": xavier_uniform(key, fan_in, fan_out),
            "b": jnp.zeros((fan_out,), jnp.float32)}          # init_emb: bias = 0


def batchnorm_train(x, eps=1e-5):
    # BatchNorm1d, training mode, gamma=1 / beta=0 (fresh module)
    # TODO(synk): fuse per-column BN stats into the GIN kernel epilogue (needs a
    # cross-row-block stats accumulation pass); kept in plain JAX here.
    mean = jnp.mean(x, axis=0, keepdims=True)
    var = jnp.mean((x - mean) ** 2, axis=0, keepdims=True)
    return (x - mean) / jnp.sqrt(var + eps)


def mixup_data(key, y, alpha):
    k1, k2 = jax.random.split(key)
    lam = jax.random.beta(k1, alpha, alpha)
    perm = jax.random.permutation(k2, y.shape[0])
    return lam * y + (1.0 - lam) * y[perm, :]


# TODO(synk): mixup_geo_data / mixup_binary_data are not defined in the provided
# source; geo is approximated by linear mixup, binary by a Bernoulli(lam) mask.
def mixup_geo_data(key, y, alpha):
    return mixup_data(key, y, alpha)


def mixup_binary_data(key, y, alpha):
    k1, k2, k3 = jax.random.split(key, 3)
    lam = jax.random.beta(k1, alpha, alpha)
    perm = jax.random.permutation(k2, y.shape[0])
    mask = jax.random.bernoulli(k3, lam, y.shape)
    return jnp.where(mask, y, y[perm, :])


def encoder_forward(enc_params, x, a_hat, pool):
    """InfoGraph GIN encoder: per layer  h = BN(ReLU(MLP(A_hat @ h)))."""
    # TODO(synk): for large graphs the dense A_hat should become a segment
    # gather/scatter-add kernel driven by PrefetchScalarGridSpec row offsets.
    h = x
    xs = []
    for layer in enc_params:
        h = pallas_gin_layer(a_hat, h,
                             layer["l1"]["w"], layer["l1"]["b"],
                             layer["l2"]["w"], layer["l2"]["b"])
        h = batchnorm_train(h)
        xs.append(h)
    xpool = [pallas_matmul(pool, xi) for xi in xs]            # global_add_pool, no bias
    y = jnp.concatenate(xpool, axis=1)                        # (G, hidden*L)
    m = jnp.concatenate(xs, axis=1)                           # (N, hidden*L)
    return y, m


def proj_head_forward(p, x):
    h = pallas_matmul(x, p["l1"]["w"], p["l1"]["b"], activation="relu")
    return pallas_matmul(h, p["l2"]["w"], p["l2"]["b"])


def ff_forward(p, x):
    h = pallas_matmul(x, p["l1"]["w"], p["l1"]["b"], activation="relu")
    h = pallas_matmul(h, p["l2"]["w"], p["l2"]["b"], activation="relu")
    h = pallas_matmul(h, p["l3"]["w"], p["l3"]["b"], activation="relu")
    sc = pallas_matmul(x, p["sc"]["w"], p["sc"]["b"])
    return h + sc


def local_global_loss_jsd(l_enc, g_enc, batch):
    num_graphs = g_enc.shape[0]
    num_nodes = l_enc.shape[0]
    pos_mask = jax.nn.one_hot(batch, num_graphs, dtype=jnp.float32)
    neg_mask = 1.0 - pos_mask
    # (N, G) similarity contracting last dims inside the kernel (no host transpose).
    res = pallas_matmul(l_enc, g_enc, transpose_rhs=True)
    log2 = math.log(2.0)
    e_pos = jnp.sum(log2 - jax.nn.softplus(-(res * pos_mask))) / num_nodes
    e_neg = jnp.sum(jax.nn.softplus(-(res * neg_mask)) + res * neg_mask - log2)
    e_neg = e_neg / (num_nodes * (num_graphs - 1))
    return e_neg - e_pos


def mcl_forward(params, x, a_hat, pool, batch, key, *, mixup_alpha, temperature):
    y, m = encoder_forward(params["encoder"], x, a_hat, pool)

    ks = jax.random.split(key, 7)
    _ = mixup_data(ks[0], y, mixup_alpha)                     # y_positive1_1 (unused, as in ref)
    _ = mixup_data(ks[1], y, mixup_alpha)                     # y_positive2_1 (unused, as in ref)
    y_p1_2 = mixup_geo_data(ks[2], y, mixup_alpha)
    y_p2_2 = mixup_geo_data(ks[3], y, mixup_alpha)
    y_p1_3 = mixup_binary_data(ks[4], y, mixup_alpha)
    y_p2_3 = mixup_binary_data(ks[5], y, mixup_alpha)
    y_positive1 = jnp.concatenate([y_p1_2, y_p1_3], axis=0)
    y_positive2 = jnp.concatenate([y_p2_2, y_p2_3], axis=0)
    index = jax.random.permutation(ks[6], y_positive1.shape[0])[: y.shape[0]]
    y_positive1 = y_positive1[index, :]
    y_positive2 = y_positive2[index, :]
    y_mix = jnp.concatenate([y_positive1, y_positive2], axis=0)

    hiddens = proj_head_forward(params["proj_head"], y_mix)
    hiddens = hiddens / jnp.maximum(
        jnp.linalg.norm(hiddens, axis=1, keepdims=True), 1e-12)  # F.normalize(dim=1)
    h1, h2 = jnp.split(hiddens, 2, axis=0)
    nt_xent_loss = pallas_nt_xent(h1, h2, temperature)

    # InfoGraph branch: computed (as in the reference forward) but not returned.
    g_enc = ff_forward(params["global_d"], y)
    l_enc = ff_forward(params["local_d"], m)
    _info_graph_loss = local_global_loss_jsd(l_enc, g_enc, batch)  # prior=False -> PRIOR = 0

    return nt_xent_loss


# ----------------------------------------------------------------------------
# Deterministic parameter construction.
# ----------------------------------------------------------------------------
def build_params(key, num_features, hidden_dim, num_gc_layers):
    emb = hidden_dim * num_gc_layers
    keys = iter(jax.random.split(key, 64))
    enc = []
    for i in range(num_gc_layers):
        fin = num_features if i == 0 else hidden_dim
        enc.append({"l1": linear_params(next(keys), fin, hidden_dim),
                    "l2": linear_params(next(keys), hidden_dim, hidden_dim)})
    proj = {"l1": linear_params(next(keys), emb, emb),
            "l2": linear_params(next(keys), emb, emb)}
    def ff():
        return {"l1": linear_params(next(keys), emb, emb),
                "l2": linear_params(next(keys), emb, emb),
                "l3": linear_params(next(keys), emb, emb),
                "sc": linear_params(next(keys), emb, emb)}
    return {"encoder": enc, "proj_head": proj, "local_d": ff(), "global_d": ff()}


if __name__ == "__main__":
    # Small synthetic graph batch: 4 graphs x 4 nodes (ring graphs), 8 input features.
    num_graphs = 4
    nodes_per_graph = 4
    num_features = 8
    hidden_dim = 16
    num_gc_layers = 2
    mixup_alpha = 1.0
    temperature = 0.2

    n_nodes = num_graphs * nodes_per_graph

    root = jax.random.PRNGKey(0)
    k_param, k_x, k_fwd = jax.random.split(root, 3)

    params = build_params(k_param, num_features, hidden_dim, num_gc_layers)

    x = jax.random.normal(k_x, (n_nodes, num_features), jnp.float32)

    src, dst = [], []
    for g in range(num_graphs):
        base = g * nodes_per_graph
        for i in range(nodes_per_graph):
            j = (i + 1) % nodes_per_graph
            src += [base + i, base + j]
            dst += [base + j, base + i]
    edge_index = jnp.array([src, dst], dtype=jnp.int32)       # (2, E)
    batch = jnp.repeat(jnp.arange(num_graphs, dtype=jnp.int32), nodes_per_graph)

    # Dense GIN operators: A_hat = A + (1+eps)*I (eps=0), pooling matrix P (G, N).
    adj = jnp.zeros((n_nodes, n_nodes), jnp.float32)
    adj = adj.at[edge_index[1], edge_index[0]].add(1.0)
    a_hat = adj + jnp.eye(n_nodes, dtype=jnp.float32)
    pool = jax.nn.one_hot(batch, num_graphs, dtype=jnp.float32).T  # (G, N)

    loss = mcl_forward(params, x, a_hat, pool, batch, k_fwd,
                       mixup_alpha=mixup_alpha, temperature=temperature)
    jax.block_until_ready(loss)
    assert loss.shape == () and jnp.isfinite(loss)
    print("KERNEL_OK")
</pallas_src>

<mosaic_0001>
module attributes {stable_mosaic.version = 11 : i64} {
  func.func @_gin_layer_kernel(%arg0: i32, %arg1: i32, %arg2: memref<128x128xbf16, #tpu.memory_space<vmem>>, %arg3: memref<128x128xbf16, #tpu.memory_space<vmem>>, %arg4: memref<128x128xbf16, #tpu.memory_space<vmem>>, %arg5: memref<1x128xf32, #tpu.memory_space<vmem>>, %arg6: memref<128x128xbf16, #tpu.memory_space<vmem>>, %arg7: memref<1x128xf32, #tpu.memory_space<vmem>>, %arg8: memref<128x128xf32, #tpu.memory_space<vmem>>, %arg9: memref<128x128xf32, #tpu.memory_space<vmem>>) attributes {dimension_semantics = [#tpu.dimension_semantics<parallel>, #tpu.dimension_semantics<arbitrary>], iteration_bounds = array<i64: 1, 1>, scalar_prefetch = 0 : i64, scratch_operands = 1 : i64, tpu.core_type = #tpu.core_type<tc>, window_params = [{transform_indices = @transform_0, window_bounds = array<i64: 128, 128>}, {transform_indices = @transform_1, window_bounds = array<i64: 128, 128>}, {pipeline_mode = #tpu.pipeline_mode<synchronous>, transform_indices = @transform_2, window_bounds = array<i64: 128, 128>}, {pipeline_mode = #tpu.pipeline_mode<synchronous>, transform_indices = @transform_3, window_bounds = array<i64: 1, 128>}, {pipeline_mode = #tpu.pipeline_mode<synchronous>, transform_indices = @transform_4, window_bounds = array<i64: 128, 128>}, {pipeline_mode = #tpu.pipeline_mode<synchronous>, transform_indices = @transform_5, window_bounds = array<i64: 1, 128>}, {transform_indices = @transform_6, window_bounds = array<i64: 128, 128>}]} {
    %c0_i32 = arith.constant 0 : i32
    %0 = arith.cmpi eq, %arg1, %c0_i32 : i32
    %1 = arith.extui %0 : i1 to i32
    %c0_i32_0 = arith.constant 0 : i32
    %2 = arith.cmpi ne, %1, %c0_i32_0 : i32
    scf.if %2 {
      %cst_10 = arith.constant 0.000000e+00 : f32
      %12 = vector.broadcast %cst_10 : f32 to vector<128x128xf32>
      %c0_11 = arith.constant 0 : index
      %c0_12 = arith.constant 0 : index
      %13 = vector.load %arg9[%c0_11, %c0_12] : memref<128x128xf32, #tpu.memory_space<vmem>>, vector<128x128xf32>
      tpu.vector_store %arg9[%c0_11, %c0_12], %12 {strides = array<i32>} : memref<128x128xf32, #tpu.memory_space<vmem>>, vector<128x128xf32>,
    } else {
    }
    %c0 = arith.constant 0 : index
    %c0_1 = arith.constant 0 : index
    %3 = vector.load %arg9[%c0, %c0_1] : memref<128x128xf32, #tpu.memory_space<vmem>>, vector<128x128xf32>
    %c0_2 = arith.constant 0 : index
    %c0_3 = arith.constant 0 : index
    %4 = vector.load %arg2[%c0_2, %c0_3] : memref<128x128xbf16, #tpu.memory_space<vmem>>, vector<128x128xbf16>
    %c0_4 = arith.constant 0 : index
    %c0_5 = arith.constant 0 : index
    %5 = vector.load %arg3[%c0_4, %c0_5] : memref<128x128xbf16, #tpu.memory_space<vmem>>, vector<128x128xbf16>
    %cst = arith.constant dense<0.000000e+00> : vector<128x128xf32>
    %6 = tpu.matmul %4, %5, %cst {dimension_numbers = #tpu.dot_dimension_numbers<[1], [0], [0], [1], [0, 0, 1, 1], [], []>} : vector<128x128xbf16>, vector<128x128xbf16>, vector<128x128xf32> -> vector<128x128xf32>
    %7 = arith.addf %3, %6 : vector<128x128xf32>
    %c0_6 = arith.constant 0 : index
    %c0_7 = arith.constant 0 : index
    %8 = vector.load %arg9[%c0_6, %c0_7] : memref<128x128xf32, #tpu.memory_space<vmem>>, vector<128x128xf32>
    tpu.vector_store %arg9[%c0_6, %c0_7], %7 {strides = array<i32>} : memref<128x128xf32, #tpu.memory_space<vmem>>, vector<128x128xf32>,
    %c0_i32_8 = arith.constant 0 : i32
    %9 = arith.cmpi eq, %arg1, %c0_i32_8 : i32
    %10 = arith.extui %9 : i1 to i32
    %c0_i32_9 = arith.constant 0 : i32
    %11 = arith.cmpi ne, %10, %c0_i32_9 : i32
    scf.if %11 {
      %c0_10 = arith.constant 0 : index
      %c0_11 = arith.constant 0 : index
      %12 = vector.load %arg9[%c0_10, %c0_11] : memref<128x128xf32, #tpu.memory_space<vmem>>, vector<128x128xf32>
      %13 = arith.truncf %12 : vector<128x128xf32> to vector<128x128xbf16>
      %c0_12 = arith.constant 0 : index
      %c0_13 = arith.constant 0 : index
      %14 = vector.load %arg4[%c0_12, %c0_13] : memref<128x128xbf16, #tpu.memory_space<vmem>>, vector<128x128xbf16>
      %cst_14 = arith.constant dense<0.000000e+00> : vector<128x128xf32>
      %15 = tpu.matmul %13, %14, %cst_14 {dimension_numbers = #tpu.dot_dimension_numbers<[1], [0], [0], [1], [0, 0, 1, 1], [], []>} : vector<128x128xbf16>, vector<128x128xbf16>, vector<128x128xf32> -> vector<128x128xf32>
      %c0_15 = arith.constant 0 : index
      %c0_16 = arith.constant 0 : index
      %16 = vector.load %arg5[%c0_15, %c0_16] : memref<1x128xf32, #tpu.memory_space<vmem>>, vector<1x128xf32>
      %17 = vector.broadcast %16 : vector<1x128xf32> to vector<128x128xf32>
      %18 = arith.addf %15, %17 : vector<128x128xf32>
      %cst_17 = arith.constant 0.000000e+00 : f32
      %19 = vector.broadcast %cst_17 : f32 to vector<128x128xf32>
      %20 = arith.maximumf %18, %19 : vector<128x128xf32>
      %21 = arith.truncf %20 : vector<128x128xf32> to vector<128x128xbf16>
      %c0_18 = arith.constant 0 : index
      %c0_19 = arith.constant 0 : index
      %22 = vector.load %arg6[%c0_18, %c0_19] : memref<128x128xbf16, #tpu.memory_space<vmem>>, vector<128x128xbf16>
      %cst_20 = arith.constant dense<0.000000e+00> : vector<128x128xf32>
      %23 = tpu.matmul %21, %22, %cst_20 {dimension_numbers = #tpu.dot_dimension_numbers<[1], [0], [0], [1], [0, 0, 1, 1], [], []>} : vector<128x128xbf16>, vector<128x128xbf16>, vector<128x128xf32> -> vector<128x128xf32>
      %c0_21 = arith.constant 0 : index
      %c0_22 = arith.constant 0 : index
      %24 = vector.load %arg7[%c0_21, %c0_22] : memref<1x128xf32, #tpu.memory_space<vmem>>, vector<1x128xf32>
      %25 = vector.broadcast %24 : vector<1x128xf32> to vector<128x128xf32>
      %26 = arith.addf %23, %25 : vector<128x128xf32>
      %cst_23 = arith.constant 0.000000e+00 : f32
      %27 = vector.broadcast %cst_23 : f32 to vector<128x128xf32>
      %28 = arith.maximumf %26, %27 : vector<128x128xf32>
      %c0_24 = arith.constant 0 : index
      %c0_25 = arith.constant 0 : index
      %29 = vector.load %arg8[%c0_24, %c0_25] : memref<128x128xf32, #tpu.memory_space<vmem>>, vector<128x128xf32>
      tpu.vector_store %arg8[%c0_24, %c0_25], %28 {strides = array<i32>} : memref<128x128xf32, #tpu.memory_space<vmem>>, vector<128x128xf32>,
    } else {
    }
    return
  }
  func.func @transform_0(%arg0: i32, %arg1: i32) -> (i32, i32) {
    %c0_i32 = arith.constant 0 : i32
    return %arg0, %arg1 : i32, i32
  }
  func.func @transform_1(%arg0: i32, %arg1: i32) -> (i32, i32) {
    %c0_i32 = arith.constant 0 : i32
    %c0_i32_0 = arith.constant 0 : i32
    return %arg1, %c0_i32 : i32, i32
  }
  func.func @transform_2(%arg0: i32, %arg1: i32) -> (i32, i32) {
    %c0_i32 = arith.constant 0 : i32
    %c0_i32_0 = arith.constant 0 : i32
    %c0_i32_1 = arith.constant 0 : i32
    return %c0_i32, %c0_i32_0 : i32, i32
  }
  func.func @transform_3(%arg0: i32, %arg1: i32) -> (i32, i32) {
    %c0_i32 = arith.constant 0 : i32
    %c0_i32_0 = arith.constant 0 : i32
    %c0_i32_1 = arith.constant 0 : i32
    return %c0_i32, %c0_i32_0 : i32, i32
  }
  func.func @transform_4(%arg0: i32, %arg1: i32) -> (i32, i32) {
    %c0_i32 = arith.constant 0 : i32
    %c0_i32_0 = arith.constant 0 : i32
    %c0_i32_1 = arith.constant 0 : i32
    return %c0_i32, %c0_i32_0 : i32, i32
  }
  func.func @transform_5(%arg0: i32, %arg1: i32) -> (i32, i32) {
    %c0_i32 = arith.constant 0 : i32
    %c0_i32_0 = arith.constant 0 : i32
    %c0_i32_1 = arith.constant 0 : i32
    return %c0_i32, %c0_i32_0 : i32, i32
  }
  func.func @transform_6(%arg0: i32, %arg1: i32) -> (i32, i32) {
    %c0_i32 = arith.constant 0 : i32
    %c0_i32_0 = arith.constant 0 : i32
    return %arg0, %c0_i32 : i32, i32
  }
}

</mosaic_0001>

<llo_original>
// kernel: tpu_custom_call.1
$region0: #{tpu_custom_call.1}
  #allocation0 [shape = 'u32[]', space=smem, size = 0x4, offset = 0x4, fixed_abs, tag = 'smem constant byte address 0x4 - core index']
  #allocation1 [shape = 'u32[144,128]{1,0:T(1,128)}', space=vmem, size = 0x12000, scoped, tag = 'internal scratch']
  #allocation2 [shape = 'f32[128,128]{1,0:T(8,128)}', space=vmem, size = 0x10000, scoped, tag = 'scratch operand']
  %s0 = inlined_call_operand.hbm [shape: bf16[128,128], index: 0, kind: input, shape index: {}]
  %s1 = inlined_call_operand.hbm [shape: bf16[128,128], index: 1, kind: input, shape index: {}]
  %s2 = inlined_call_operand.hbm [shape: bf16[128,128], index: 2, kind: input, shape index: {}]
  %s3 = inlined_call_operand.vmem [shape: f32[1,128], index: 3, kind: input, shape index: {}]
  %s4 = inlined_call_operand.hbm [shape: bf16[128,128], index: 4, kind: input, shape index: {}]
  %s5 = inlined_call_operand.vmem [shape: f32[1,128], index: 5, kind: input, shape index: {}]
  %s6 = inlined_call_operand.hbm [shape: f32[128,128], index: 6, kind: output, shape index: {}]
  %s7 = sld [smem:[#allocation0]]
  $region58: #{tpu_custom_call.1} parent=0
    _
  %s9 = ssub.s32 1, %s7
  %s10 = scalar_select 0, %s9, %s7
  $region1: #{tpu_custom_call.1} parent=0
    #allocation3 [shape = 'u8[32768]{0}', space=vmem, size = 0x8000, scoped, tag = 'input window, operand 0, single buffered']
    #allocation4 [shape = 's32[1]{0}', space=sflag, size = 0x4, scoped, tag = 'scoped memory for tpu_custom_call.1']
    #allocation5 [shape = 's32[1]{0}', space=sflag, size = 0x4, scoped, tag = 'scoped memory for tpu_custom_call.1']
    #allocation6 [shape = 'u8[32768]{0}', space=vmem, size = 0x8000, scoped, tag = 'input window, operand 1, single buffered']
    #allocation7 [shape = 's32[1]{0}', space=sflag, size = 0x4, scoped, tag = 'scoped memory for tpu_custom_call.1']
    #allocation8 [shape = 'u8[32768]{0}', space=vmem, size = 0x8000, scoped, tag = 'input window, operand 2, single buffered']
    #allocation9 [shape = 'u8[32768]{0}', space=vmem, size = 0x8000, scoped, tag = 'input window, operand 4, single buffered']
    #allocation10 [shape = 's32[1]{0}', space=sflag, size = 0x4, scoped, tag = 'scoped memory for tpu_custom_call.1']
    #allocation11 [shape = 'u8[65536]{0}', space=vmem, size = 0x10000, scoped, tag = 'output window, operand 0, single buffered']
    %11 = vsyncpa [#allocation4], 0
    %12 = vsyncpa [#allocation7], 0
    %13 = vsyncpa [#allocation10], 0
    %14 = vsyncpa [#allocation5], 0
    // Predicated region
    $region2: #{tpu_custom_call.1} parent=1 // pred_check
      _
    $region3: #{tpu_custom_call.1} parent=1 // pred_check_branch
      %16 = sbr.rel (0) target = $region5
    $region4: #{tpu_custom_call.1} parent=1 // pred_region
      %s18 = ssub.s32 1024, 1024
      %19 = vsyncadd [#allocation4], %s18
      %s20 = sshll.u32 [#allocation3], 4
      %s21 = int_to_ptr.vmem [resolvable:$true] %s20
      %26 = dma.hbm_to_vmem [thread:$0]  %s0, 1024, %s21, [#allocation4], 64, 64, 4
    $region5: #{tpu_custom_call.1} parent=1 // pred_fallthru
      _
    // Predicated region
    $region6: #{tpu_custom_call.1} parent=1 // pred_check
      _
    $region7: #{tpu_custom_call.1} parent=1 // pred_check_branch
      %28 = sbr.rel (0) target = $region9
    $region8: #{tpu_custom_call.1} parent=1 // pred_region
      %s30 = ssub.s32 1024, 1024
      %31 = vsyncadd [#allocation7], %s30
      %s32 = sshll.u32 [#allocation6], 4
      %s33 = int_to_ptr.vmem [resolvable:$true] %s32
      %38 = dma.hbm_to_vmem [thread:$0]  %s1, 1024, %s33, [#allocation7], 64, 64, 4
    $region9: #{tpu_custom_call.1} parent=1 // pred_fallthru
      _
    // Predicated region
    $region10: #{tpu_custom_call.1} parent=1 // pred_check
      _
    $region11: #{tpu_custom_call.1} parent=1 // pred_check_branch
      %40 = sbr.rel (0) target = $region13
    $region12: #{tpu_custom_call.1} parent=1 // pred_region
      %s42 = ssub.s32 1024, 1024
      %43 = vsyncadd [#allocation7], %s42
      %s44 = sshll.u32 [#allocation8], 4
      %s45 = int_to_ptr.vmem [resolvable:$true] %s44
      %50 = dma.hbm_to_vmem [thread:$0]  %s2, 1024, %s45, [#allocation7], 64, 64, 4
    $region13: #{tpu_custom_call.1} parent=1 // pred_fallthru
      _
    // Predicated region
    $region14: #{tpu_custom_call.1} parent=1 // pred_check
      _
    $region15: #{tpu_custom_call.1} parent=1 // pred_check_branch
      %52 = sbr.rel (0) target = $region17
    $region16: #{tpu_custom_call.1} parent=1 // pred_region
      _
    $region17: #{tpu_custom_call.1} parent=1 // pred_fallthru
      _
    // Predicated region
    $region18: #{tpu_custom_call.1} parent=1 // pred_check
      _
    $region19: #{tpu_custom_call.1} parent=1 // pred_check_branch
      %54 = sbr.rel (0) target = $region21
    $region20: #{tpu_custom_call.1} parent=1 // pred_region
      %s56 = ssub.s32 1024, 1024
      %57 = vsyncadd [#allocation10], %s56
      %s58 = sshll.u32 [#allocation9], 4
      %s59 = int_to_ptr.vmem [resolvable:$true] %s58
      %64 = dma.hbm_to_vmem [thread:$0]  %s4, 1024, %s59, [#allocation10], 64, 64, 4
    $region21: #{tpu_custom_call.1} parent=1 // pred_fallthru
      _
    // Predicated region
    $region22: #{tpu_custom_call.1} parent=1 // pred_check
      _
    $region23: #{tpu_custom_call.1} parent=1 // pred_check_branch
      %66 = sbr.rel (0) target = $region25
    $region24: #{tpu_custom_call.1} parent=1 // pred_region
      _
    $region25: #{tpu_custom_call.1} parent=1 // pred_fallthru
      _
    // Predicated region
    $region26: #{tpu_custom_call.1} parent=1 // pred_check
      _
    $region27: #{tpu_custom_call.1} parent=1 // pred_check_branch
      %68 = sbr.rel (0) target = $region29
    $region28: #{tpu_custom_call.1} parent=1 // pred_region
      %69 = dma.done [#allocation4], 1024
    $region29: #{tpu_custom_call.1} parent=1 // pred_fallthru
      _
    // Predicated region
    $region30: #{tpu_custom_call.1} parent=1 // pred_check
      _
    $region31: #{tpu_custom_call.1} parent=1 // pred_check_branch
      %71 = sbr.rel (0) target = $region33
    $region32: #{tpu_custom_call.1} parent=1 // pred_region
      %72 = dma.done [#allocation7], 1024
    $region33: #{tpu_custom_call.1} parent=1 // pred_fallthru
      _
    // Predicated region
    $region34: #{tpu_custom_call.1} parent=1 // pred_check
      _
    $region35: #{tpu_custom_call.1} parent=1 // pred_check_branch
      %74 = sbr.rel (0) target = $region37
    $region36: #{tpu_custom_call.1} parent=1 // pred_region
      %75 = dma.done [#allocation7], 1024
    $region37: #{tpu_custom_call.1} parent=1 // pred_fallthru
      _
    // Predicated region
    $region38: #{tpu_custom_call.1} parent=1 // pred_check
      _
    $region39: #{tpu_custom_call.1} parent=1 // pred_check_branch
      %77 = sbr.rel (0) target = $region41
    $region40: #{tpu_custom_call.1} parent=1 // pred_region
      %78 = dma.done [#allocation10], 1024
    $region41: #{tpu_custom_call.1} parent=1 // pred_fallthru
      _
    %p80 = scmp.eq.s32.totalorder 0, 0
    // Predicated region
    $region42: #{tpu_custom_call.1} parent=1 // pred_check
      %p81 = pneg %p80
    $region43: #{tpu_custom_call.1} parent=1 // pred_check_branch
      %83 = sbr.rel (%p81) target = $region45
    $region44: #{tpu_custom_call.1} parent=1 // pred_region
      %84 = vst [vmem:[#allocation2] sm:$0xff] 0.0
      %85 = vst [vmem:[#allocation2 + $0x8] sm:$0xff] 0.0
      %86 = vst [vmem:[#allocation2 + $0x10] sm:$0xff] 0.0
      %87 = vst [vmem:[#allocation2 + $0x18] sm:$0xff] 0.0
      %88 = vst [vmem:[#allocation2 + $0x20] sm:$0xff] 0.0
      %89 = vst [vmem:[#allocation2 + $0x28] sm:$0xff] 0.0
      %90 = vst [vmem:[#allocation2 + $0x30] sm:$0xff] 0.0
      %91 = vst [vmem:[#allocation2 + $0x38] sm:$0xff] 0.0
      %92 = vst [vmem:[#allocation2 + $0x40] sm:$0xff] 0.0
      %93 = vst [vmem:[#allocation2 + $0x48] sm:$0xff] 0.0
      %94 = vst [vmem:[#allocation2 + $0x50] sm:$0xff] 0.0
      %95 = vst [vmem:[#allocation2 + $0x58] sm:$0xff] 0.0
      %96 = vst [vmem:[#allocation2 + $0x60] sm:$0xff] 0.0
      %97 = vst [vmem:[#allocation2 + $0x68] sm:$0xff] 0.0
      %98 = vst [vmem:[#allocation2 + $0x70] sm:$0xff] 0.0
      %99 = vst [vmem:[#allocation2 + $0x78] sm:$0xff] 0.0
    $region45: #{tpu_custom_call.1} parent=1 // pred_fallthru
      _
    %v100 = vld [vmem:[#allocation2] sm:$0xff]
    %v101 = vld [vmem:[#allocation2 + $0x8] sm:$0xff]
    %v102 = vld [vmem:[#allocation2 + $0x10] sm:$0xff]
    %v103 = vld [vmem:[#allocation2 + $0x18] sm:$0xff]
    %v104 = vld [vmem:[#allocation2 + $0x20] sm:$0xff]
    %v105 = vld [vmem:[#allocation2 + $0x28] sm:$0xff]
    %v106 = vld [vmem:[#allocation2 + $0x30] sm:$0xff]
    %v107 = vld [vmem:[#allocation2 + $0x38] sm:$0xff]
    %v108 = vld [vmem:[#allocation2 + $0x40] sm:$0xff]
    %v109 = vld [vmem:[#allocation2 + $0x48] sm:$0xff]
    %v110 = vld [vmem:[#allocation2 + $0x50] sm:$0xff]
    %v111 = vld [vmem:[#allocation2 + $0x58] sm:$0xff]
    %v112 = vld [vmem:[#allocation2 + $0x60] sm:$0xff]
    %v113 = vld [vmem:[#allocation2 + $0x68] sm:$0xff]
    %v114 = vld [vmem:[#allocation2 + $0x70] sm:$0xff]
    %v115 = vld [vmem:[#allocation2 + $0x78] sm:$0xff]
    %v116 = vld [vmem:[#allocation3] sm:$0xf]
    %v117 = vld [vmem:[#allocation3 + $0x4] sm:$0xf]
    %v118 = vld [vmem:[#allocation3 + $0x8] sm:$0xf]
    %v119 = vld [vmem:[#allocation3 + $0xc] sm:$0xf]
    %v120 = vld [vmem:[#allocation3 + $0x10] sm:$0xf]
    %v121 = vld [vmem:[#allocation3 + $0x14] sm:$0xf]
    %v122 = vld [vmem:[#allocation3 + $0x18] sm:$0xf]
    %v123 = vld [vmem:[#allocation3 + $0x1c] sm:$0xf]
    %v124 = vld [vmem:[#allocation3 + $0x20] sm:$0xf]
    %v125 = vld [vmem:[#allocation3 + $0x24] sm:$0xf]
    %v126 = vld [vmem:[#allocation3 + $0x28] sm:$0xf]
    %v127 = vld [vmem:[#allocation3 + $0x2c] sm:$0xf]
    %v128 = vld [vmem:[#allocation3 + $0x30] sm:$0xf]
    %v129 = vld [vmem:[#allocation3 + $0x34] sm:$0xf]
    %v130 = vld [vmem:[#allocation3 + $0x38] sm:$0xf]
    %v131 = vld [vmem:[#allocation3 + $0x3c] sm:$0xf]
    %v132 = vld [vmem:[#allocation6] sm:$0xf]
    %v133 = vld [vmem:[#allocation6 + $0x4] sm:$0xf]
    %v134 = vld [vmem:[#allocation6 + $0x8] sm:$0xf]
    %v135 = vld [vmem:[#allocation6 + $0xc] sm:$0xf]
    %v136 = vld [vmem:[#allocation6 + $0x10] sm:$0xf]
    %v137 = vld [vmem:[#allocation6 + $0x14] sm:$0xf]
    %v138 = vld [vmem:[#allocation6 + $0x18] sm:$0xf]
    %v139 = vld [vmem:[#allocation6 + $0x1c] sm:$0xf]
    %v140 = vld [vmem:[#allocation6 + $0x20] sm:$0xf]
    %v141 = vld [vmem:[#allocation6 + $0x24] sm:$0xf]
    %v142 = vld [vmem:[#allocation6 + $0x28] sm:$0xf]
    %v143 = vld [vmem:[#allocation6 + $0x2c] sm:$0xf]
    %v144 = vld [vmem:[#allocation6 + $0x30] sm:$0xf]
    %v145 = vld [vmem:[#allocation6 + $0x34] sm:$0xf]
    %v146 = vld [vmem:[#allocation6 + $0x38] sm:$0xf]
    %v147 = vld [vmem:[#allocation6 + $0x3c] sm:$0xf]
    %v164 = vunpack.c.l.b16 %v116
    %v165 = vunpack.c.l.b16 %v117
    %v166 = vunpack.c.l.b16 %v118
    %v167 = vunpack.c.l.b16 %v119
    %v168 = vunpack.c.l.b16 %v120
    %v169 = vunpack.c.l.b16 %v121
    %v170 = vunpack.c.l.b16 %v122
    %v171 = vunpack.c.l.b16 %v123
    %v172 = vunpack.c.l.b16 %v124
    %v173 = vunpack.c.l.b16 %v125
    %v174 = vunpack.c.l.b16 %v126
    %v175 = vunpack.c.l.b16 %v127
    %v176 = vunpack.c.l.b16 %v128
    %v177 = vunpack.c.l.b16 %v129
    %v178 = vunpack.c.l.b16 %v130
    %v179 = vunpack.c.l.b16 %v131
    %v180 = vpack.c.b16 %v165, %v164
    %v181 = vpack.c.b16 %v167, %v166
    %v182 = vpack.c.b16 %v169, %v168
    %v183 = vpack.c.b16 %v171, %v170
    %v184 = vpack.c.b16 %v173, %v172
    %v185 = vpack.c.b16 %v175, %v174
    %v186 = vpack.c.b16 %v177, %v176
    %v187 = vpack.c.b16 %v179, %v178
    %v212 = vunpack.c.l.b16 %v132
    %v213 = vunpack.c.l.b16 %v133
    %v214 = vunpack.c.l.b16 %v134
    %v215 = vunpack.c.l.b16 %v135
    %v216 = vunpack.c.l.b16 %v136
    %v217 = vunpack.c.l.b16 %v137
    %v218 = vunpack.c.l.b16 %v138
    %v219 = vunpack.c.l.b16 %v139
    %v220 = vunpack.c.l.b16 %v140
    %v221 = vunpack.c.l.b16 %v141
    %v222 = vunpack.c.l.b16 %v142
    %v223 = vunpack.c.l.b16 %v143
    %v224 = vunpack.c.l.b16 %v144
    %v225 = vunpack.c.l.b16 %v145
    %v226 = vunpack.c.l.b16 %v146
    %v227 = vunpack.c.l.b16 %v147
    %v228 = vpack.c.b16 %v213, %v212
    %v229 = vpack.c.b16 %v215, %v214
    %v230 = vpack.c.b16 %v217, %v216
    %v231 = vpack.c.b16 %v219, %v218
    %v232 = vpack.c.b16 %v221, %v220
    %v233 = vpack.c.b16 %v223, %v222
    %v234 = vpack.c.b16 %v225, %v224
    %v235 = vpack.c.b16 %v227, %v226
    %244 = vmatprep.subr.bf16.mxu0 0
    %245 = vmatpush1.bf16.msra.mxu0 %v228
    %246 = vmatprep.subr.bf16.mxu0 0
    %247 = vmatpush1.bf16.msra.mxu0 %v229
    %248 = vmatprep.subr.bf16.mxu0 0
    %249 = vmatpush1.bf16.msra.mxu0 %v230
    %250 = vmatprep.subr.bf16.mxu0 0
    %251 = vmatpush1.bf16.msra.mxu0 %v231
    %252 = vmatprep.subr.bf16.mxu0 0
    %253 = vmatpush1.bf16.msra.mxu0 %v232
    %254 = vmatprep.subr.bf16.mxu0 0
    %255 = vmatpush1.bf16.msra.mxu0 %v233
    %256 = vmatprep.subr.bf16.mxu0 0
    %257 = vmatpush1.bf16.msra.mxu0 %v234
    %258 = vmatprep.subr.bf16.mxu0 0
    %259 = vmatpush1.bf16.msra.mxu0 %v235
    %260 = vmatprep.subr.bf16.mxu0 0
    %261 = vmatpush1.bf16.msra.mxu0 0
    %262 = vmatprep.subr.bf16.mxu0 0
    %263 = vmatpush1.bf16.msra.mxu0 0
    %264 = vmatprep.subr.bf16.mxu0 0
    %265 = vmatpush1.bf16.msra.mxu0 0
    %266 = vmatprep.subr.bf16.mxu0 0
    %267 = vmatpush1.bf16.msra.mxu0 0
    %268 = vmatprep.subr.bf16.mxu0 0
    %269 = vmatpush1.bf16.msra.mxu0 0
    %270 = vmatprep.subr.bf16.mxu0 0
    %271 = vmatpush1.bf16.msra.mxu0 0
    %272 = vmatprep.subr.bf16.mxu0 0
    %273 = vmatpush1.bf16.msra.mxu0 0
    %274 = vmatprep.subr.bf16.mxu0 0
    %275 = vmatpush1.bf16.msra.mxu0 0
    %276 = vmatprep.mubr.bf16.mxu0 0
    %277 = vmatmul.mubr.bf16.gmra.mrb[0].mxu0 %v180
    %v278 = vpop.f32.mrb[0].mxu0
    %v279 = vadd.f32 0.0, %v278
    %v280 = vpop.f32.mrb[0].mxu0
    %v281 = vpop.f32.mrb[0].mxu0
    %v282 = vadd.f32 0.0, %v281
    %v283 = vpop.f32.mrb[0].mxu0
    %284 = vmatprep.mubr.bf16.mxu0 0
    %285 = vmatmul.mubr.bf16.gmra.mrb[0].mxu0 %v181
    %v286 = vpop.f32.mrb[0].mxu0
    %v287 = vadd.f32 0.0, %v286
    %v288 = vpop.f32.mrb[0].mxu0
    %v289 = vpop.f32.mrb[0].mxu0
    %v290 = vadd.f32 0.0, %v289
    %v291 = vpop.f32.mrb[0].mxu0
    %292 = vmatprep.mubr.bf16.mxu0 0
    %293 = vmatmul.mubr.bf16.gmra.mrb[0].mxu0 %v182
    %v294 = vpop.f32.mrb[0].mxu0
    %v295 = vadd.f32 0.0, %v294
    %v296 = vpop.f32.mrb[0].mxu0
    %v297 = vpop.f32.mrb[0].mxu0
    %v298 = vadd.f32 0.0, %v297
    %v299 = vpop.f32.mrb[0].mxu0
    %300 = vmatprep.mubr.bf16.mxu0 0
    %301 = vmatmul.mubr.bf16.gmra.mrb[0].mxu0 %v183
    %v302 = vpop.f32.mrb[0].mxu0
    %v303 = vadd.f32 0.0, %v302
    %v304 = vpop.f32.mrb[0].mxu0
    %v305 = vpop.f32.mrb[0].mxu0
    %v306 = vadd.f32 0.0, %v305
    %v307 = vpop.f32.mrb[0].mxu0
    %308 = vmatprep.mubr.bf16.mxu0 0
    %309 = vmatmul.mubr.bf16.gmra.mrb[0].mxu0 %v184
    %v310 = vpop.f32.mrb[0].mxu0
    %v311 = vadd.f32 0.0, %v310
    %v312 = vpop.f32.mrb[0].mxu0
    %v313 = vpop.f32.mrb[0].mxu0
    %v314 = vadd.f32 0.0, %v313
    %v315 = vpop.f32.mrb[0].mxu0
    %316 = vmatprep.mubr.bf16.mxu0 0
    %317 = vmatmul.mubr.bf16.gmra.mrb[0].mxu0 %v185
    %v318 = vpop.f32.mrb[0].mxu0
    %v319 = vadd.f32 0.0, %v318
    %v320 = vpop.f32.mrb[0].mxu0
    %v321 = vpop.f32.mrb[0].mxu0
    %v322 = vadd.f32 0.0, %v321
    %v323 = vpop.f32.mrb[0].mxu0
    %324 = vmatprep.mubr.bf16.mxu0 0
    %325 = vmatmul.mubr.bf16.gmra.mrb[0].mxu0 %v186
    %v326 = vpop.f32.mrb[0].mxu0
    %v327 = vadd.f32 0.0, %v326
    %v328 = vpop.f32.mrb[0].mxu0
    %v329 = vpop.f32.mrb[0].mxu0
    %v330 = vadd.f32 0.0, %v329
    %v331 = vpop.f32.mrb[0].mxu0
    %332 = vmatprep.mubr.bf16.mxu0 0
    %333 = vmatmul.mubr.bf16.gmra.mrb[0].mxu0 %v187
    %v334 = vpop.f32.mrb[0].mxu0
    %v335 = vadd.f32 0.0, %v334
    %v336 = vpop.f32.mrb[0].mxu0
    %v337 = vpop.f32.mrb[0].mxu0
    %v338 = vadd.f32 0.0, %v337
    %v339 = vpop.f32.mrb[0].mxu0
    %340 = vdwg.mxu0
    %v341 = vadd.f32 %v100, %v279
    %v342 = vadd.f32 %v101, %v282
    %v343 = vadd.f32 %v102, %v287
    %v344 = vadd.f32 %v103, %v290
    %v345 = vadd.f32 %v104, %v295
    %v346 = vadd.f32 %v105, %v298
    %v347 = vadd.f32 %v106, %v303
    %v348 = vadd.f32 %v107, %v306
    %v349 = vadd.f32 %v108, %v311
    %v350 = vadd.f32 %v109, %v314
    %v351 = vadd.f32 %v110, %v319
    %v352 = vadd.f32 %v111, %v322
    %v353 = vadd.f32 %v112, %v327
    %v354 = vadd.f32 %v113, %v330
    %v355 = vadd.f32 %v114, %v335
    %v356 = vadd.f32 %v115, %v338
    %357 = vst [vmem:[#allocation2] sm:$0xff] %v341
    %358 = vst [vmem:[#allocation2 + $0x8] sm:$0xff] %v342
    %359 = vst [vmem:[#allocation2 + $0x10] sm:$0xff] %v343
    %360 = vst [vmem:[#allocation2 + $0x18] sm:$0xff] %v344
    %361 = vst [vmem:[#allocation2 + $0x20] sm:$0xff] %v345
    %362 = vst [vmem:[#allocation2 + $0x28] sm:$0xff] %v346
    %363 = vst [vmem:[#allocation2 + $0x30] sm:$0xff] %v347
    %364 = vst [vmem:[#allocation2 + $0x38] sm:$0xff] %v348
    %365 = vst [vmem:[#allocation2 + $0x40] sm:$0xff] %v349
    %366 = vst [vmem:[#allocation2 + $0x48] sm:$0xff] %v350
    %367 = vst [vmem:[#allocation2 + $0x50] sm:$0xff] %v351
    %368 = vst [vmem:[#allocation2 + $0x58] sm:$0xff] %v352
    %369 = vst [vmem:[#allocation2 + $0x60] sm:$0xff] %v353
    %370 = vst [vmem:[#allocation2 + $0x68] sm:$0xff] %v354
    %371 = vst [vmem:[#allocation2 + $0x70] sm:$0xff] %v355
    %372 = vst [vmem:[#allocation2 + $0x78] sm:$0xff] %v356
    // Predicated region
    $region46: #{tpu_custom_call.1} parent=1 // pred_check
      %p373 = pneg %p80
    $region47: #{tpu_custom_call.1} parent=1 // pred_check_branch
      %375 = sbr.rel (%p373) target = $region49
    $region48: #{tpu_custom_call.1} parent=1 // pred_region
      %v376 = vld [vmem:[#allocation2] sm:$0xff]
      %v377 = vld [vmem:[#allocation2 + $0x8] sm:$0xff]
      %v378 = vld [vmem:[#allocation2 + $0x10] sm:$0xff]
      %v379 = vld [vmem:[#allocation2 + $0x18] sm:$0xff]
      %v380 = vld [vmem:[#allocation2 + $0x20] sm:$0xff]
      %v381 = vld [vmem:[#allocation2 + $0x28] sm:$0xff]
      %v382 = vld [vmem:[#allocation2 + $0x30] sm:$0xff]
      %v383 = vld [vmem:[#allocation2 + $0x38] sm:$0xff]
      %v384 = vld [vmem:[#allocation2 + $0x40] sm:$0xff]
      %v385 = vld [vmem:[#allocation2 + $0x48] sm:$0xff]
      %v386 = vld [vmem:[#allocation2 + $0x50] sm:$0xff]
      %v387 = vld [vmem:[#allocation2 + $0x58] sm:$0xff]
      %v388 = vld [vmem:[#allocation2 + $0x60] sm:$0xff]
      %v389 = vld [vmem:[#allocation2 + $0x68] sm:$0xff]
      %v390 = vld [vmem:[#allocation2 + $0x70] sm:$0xff]
      %v391 = vld [vmem:[#allocation2 + $0x78] sm:$0xff]
      %v392 = vpack.c.bf16 %v377, %v376
      %v393 = vpack.c.bf16 %v379, %v378
      %v394 = vpack.c.bf16 %v381, %v380
      %v395 = vpack.c.bf16 %v383, %v382
      %v396 = vpack.c.bf16 %v385, %v384
      %v397 = vpack.c.bf16 %v387, %v386
      %v398 = vpack.c.bf16 %v389, %v388
      %v399 = vpack.c.bf16 %v391, %v390
      %v400 = vld [vmem:[#allocation8] sm:$0xf]
      %v401 = vld [vmem:[#allocation8 + $0x4] sm:$0xf]
      %v402 = vld [vmem:[#allocation8 + $0x8] sm:$0xf]
      %v403 = vld [vmem:[#allocation8 + $0xc] sm:$0xf]
      %v404 = vld [vmem:[#allocation8 + $0x10] sm:$0xf]
      %v405 = vld [vmem:[#allocation8 + $0x14] sm:$0xf]
      %v406 = vld [vmem:[#allocation8 + $0x18] sm:$0xf]
      %v407 = vld [vmem:[#allocation8 + $0x1c] sm:$0xf]
      %v408 = vld [vmem:[#allocation8 + $0x20] sm:$0xf]
      %v409 = vld [vmem:[#allocation8 + $0x24] sm:$0xf]
      %v410 = vld [vmem:[#allocation8 + $0x28] sm:$0xf]
      %v411 = vld [vmem:[#allocation8 + $0x2c] sm:$0xf]
      %v412 = vld [vmem:[#allocation8 + $0x30] sm:$0xf]
      %v413 = vld [vmem:[#allocation8 + $0x34] sm:$0xf]
      %v414 = vld [vmem:[#allocation8 + $0x38] sm:$0xf]
      %v415 = vld [vmem:[#allocation8 + $0x3c] sm:$0xf]
      %v416 = vld [vmem:[%s3] sm:$0x1]
      %v418 = vlaneseq
      %v419 = vshrl.u32 %v418, 7
      %v420 = vsub.s32 0, %v419
      %v421 = vrot.slane %v416, %v420
      %v439 = vunpack.c.l.b16 %v400
      %v440 = vunpack.c.l.b16 %v401
      %v441 = vunpack.c.l.b16 %v402
      %v442 = vunpack.c.l.b16 %v403
      %v443 = vunpack.c.l.b16 %v404
      %v444 = vunpack.c.l.b16 %v405
      %v445 = vunpack.c.l.b16 %v406
      %v446 = vunpack.c.l.b16 %v407
      %v447 = vunpack.c.l.b16 %v408
      %v448 = vunpack.c.l.b16 %v409
      %v449 = vunpack.c.l.b16 %v410
      %v450 = vunpack.c.l.b16 %v411
      %v451 = vunpack.c.l.b16 %v412
      %v452 = vunpack.c.l.b16 %v413
      %v453 = vunpack.c.l.b16 %v414
      %v454 = vunpack.c.l.b16 %v415
      %v455 = vpack.c.b16 %v440, %v439
      %v456 = vpack.c.b16 %v442, %v441
      %v457 = vpack.c.b16 %v444, %v443
      %v458 = vpack.c.b16 %v446, %v445
      %v459 = vpack.c.b16 %v448, %v447
      %v460 = vpack.c.b16 %v450, %v449
      %v461 = vpack.c.b16 %v452, %v451
      %v462 = vpack.c.b16 %v454, %v453
      %471 = vmatprep.subr.bf16.mxu0 0
      %472 = vmatpush1.bf16.msra.mxu0 %v455
      %473 = vmatprep.subr.bf16.mxu0 0
      %474 = vmatpush1.bf16.msra.mxu0 %v456
      %475 = vmatprep.subr.bf16.mxu0 0
      %476 = vmatpush1.bf16.msra.mxu0 %v457
      %477 = vmatprep.subr.bf16.mxu0 0
      %478 = vmatpush1.bf16.msra.mxu0 %v458
      %479 = vmatprep.subr.bf16.mxu0 0
      %480 = vmatpush1.bf16.msra.mxu0 %v459
      %481 = vmatprep.subr.bf16.mxu0 0
      %482 = vmatpush1.bf16.msra.mxu0 %v460
      %483 = vmatprep.subr.bf16.mxu0 0
      %484 = vmatpush1.bf16.msra.mxu0 %v461
      %485 = vmatprep.subr.bf16.mxu0 0
      %486 = vmatpush1.bf16.msra.mxu0 %v462
      %487 = vmatprep.subr.bf16.mxu0 0
      %488 = vmatpush1.bf16.msra.mxu0 0
      %489 = vmatprep.subr.bf16.mxu0 0
      %490 = vmatpush1.bf16.msra.mxu0 0
      %491 = vmatprep.subr.bf16.mxu0 0
      %492 = vmatpush1.bf16.msra.mxu0 0
      %493 = vmatprep.subr.bf16.mxu0 0
      %494 = vmatpush1.bf16.msra.mxu0 0
      %495 = vmatprep.subr.bf16.mxu0 0
      %496 = vmatpush1.bf16.msra.mxu0 0
      %497 = vmatprep.subr.bf16.mxu0 0
      %498 = vmatpush1.bf16.msra.mxu0 0
      %499 = vmatprep.subr.bf16.mxu0 0
      %500 = vmatpush1.bf16.msra.mxu0 0
      %501 = vmatprep.subr.bf16.mxu0 0
      %502 = vmatpush1.bf16.msra.mxu0 0
      %503 = vmatprep.mubr.bf16.mxu0 0
      %504 = vmatmul.mubr.bf16.gmra.mrb[0].mxu0 %v392
      %v505 = vpop.f32.mrb[0].mxu0
      %v506 = vadd.f32 %v421, %v505
      %v507 = vpop.f32.mrb[0].mxu0
      %v508 = vpop.f32.mrb[0].mxu0
      %v509 = vadd.f32 %v421, %v508
      %v510 = vpop.f32.mrb[0].mxu0
      %511 = vmatprep.mubr.bf16.mxu0 0
      %512 = vmatmul.mubr.bf16.gmra.mrb[0].mxu0 %v393
      %v513 = vpop.f32.mrb[0].mxu0
      %v514 = vadd.f32 %v421, %v513
      %v515 = vpop.f32.mrb[0].mxu0
      %v516 = vpop.f32.mrb[0].mxu0
      %v517 = vadd.f32 %v421, %v516
      %v518 = vpop.f32.mrb[0].mxu0
      %519 = vmatprep.mubr.bf16.mxu0 0
      %520 = vmatmul.mubr.bf16.gmra.mrb[0].mxu0 %v394
      %v521 = vpop.f32.mrb[0].mxu0
      %v522 = vadd.f32 %v421, %v521
      %v523 = vpop.f32.mrb[0].mxu0
      %v524 = vpop.f32.mrb[0].mxu0
      %v525 = vadd.f32 %v421, %v524
      %v526 = vpop.f32.mrb[0].mxu0
      %527 = vmatprep.mubr.bf16.mxu0 0
      %528 = vmatmul.mubr.bf16.gmra.mrb[0].mxu0 %v395
      %v529 = vpop.f32.mrb[0].mxu0
      %v530 = vadd.f32 %v421, %v529
      %v531 = vpop.f32.mrb[0].mxu0
      %v532 = vpop.f32.mrb[0].mxu0
      %v533 = vadd.f32 %v421, %v532
      %v534 = vpop.f32.mrb[0].mxu0
      %535 = vmatprep.mubr.bf16.mxu0 0
      %536 = vmatmul.mubr.bf16.gmra.mrb[0].mxu0 %v396
      %v537 = vpop.f32.mrb[0].mxu0
      %v538 = vadd.f32 %v421, %v537
      %v539 = vpop.f32.mrb[0].mxu0
      %v540 = vpop.f32.mrb[0].mxu0
      %v541 = vadd.f32 %v421, %v540
      %v542 = vpop.f32.mrb[0].mxu0
      %543 = vmatprep.mubr.bf16.mxu0 0
      %544 = vmatmul.mubr.bf16.gmra.mrb[0].mxu0 %v397
      %v545 = vpop.f32.mrb[0].mxu0
      %v546 = vadd.f32 %v421, %v545
      %v547 = vpop.f32.mrb[0].mxu0
      %v548 = vpop.f32.mrb[0].mxu0
      %v549 = vadd.f32 %v421, %v548
      %v550 = vpop.f32.mrb[0].mxu0
      %551 = vmatprep.mubr.bf16.mxu0 0
      %552 = vmatmul.mubr.bf16.gmra.mrb[0].mxu0 %v398
      %v553 = vpop.f32.mrb[0].mxu0
      %v554 = vadd.f32 %v421, %v553
      %v555 = vpop.f32.mrb[0].mxu0
      %v556 = vpop.f32.mrb[0].mxu0
      %v557 = vadd.f32 %v421, %v556
      %v558 = vpop.f32.mrb[0].mxu0
      %559 = vmatprep.mubr.bf16.mxu0 0
      %560 = vmatmul.mubr.bf16.gmra.mrb[0].mxu0 %v399
      %v561 = vpop.f32.mrb[0].mxu0
      %v562 = vadd.f32 %v421, %v561
      %v563 = vpop.f32.mrb[0].mxu0
      %v564 = vpop.f32.mrb[0].mxu0
      %v565 = vadd.f32 %v421, %v564
      %v566 = vpop.f32.mrb[0].mxu0
      %567 = vdwg.mxu0
      %v568 = vmax.f32 %v506, 0.0
      %v569 = vmax.f32 %v509, 0.0
      %v570 = vmax.f32 %v514, 0.0
      %v571 = vmax.f32 %v517, 0.0
      %v572 = vmax.f32 %v522, 0.0
      %v573 = vmax.f32 %v525, 0.0
      %v574 = vmax.f32 %v530, 0.0
      %v575 = vmax.f32 %v533, 0.0
      %v576 = vmax.f32 %v538, 0.0
      %v577 = vmax.f32 %v541, 0.0
      %v578 = vmax.f32 %v546, 0.0
      %v579 = vmax.f32 %v549, 0.0
      %v580 = vmax.f32 %v554, 0.0
      %v581 = vmax.f32 %v557, 0.0
      %v582 = vmax.f32 %v562, 0.0
      %v583 = vmax.f32 %v565, 0.0
      %v584 = vpack.c.bf16 %v569, %v568
      %v585 = vpack.c.bf16 %v571, %v570
      %v586 = vpack.c.bf16 %v573, %v572
      %v587 = vpack.c.bf16 %v575, %v574
      %v588 = vpack.c.bf16 %v577, %v576
      %v589 = vpack.c.bf16 %v579, %v578
      %v590 = vpack.c.bf16 %v581, %v580
      %v591 = vpack.c.bf16 %v583, %v582
      %v592 = vld [vmem:[#allocation9] sm:$0xf]
      %v593 = vld [vmem:[#allocation9 + $0x4] sm:$0xf]
      %v594 = vld [vmem:[#allocation9 + $0x8] sm:$0xf]
      %v595 = vld [vmem:[#allocation9 + $0xc] sm:$0xf]
      %v596 = vld [vmem:[#allocation9 + $0x10] sm:$0xf]
      %v597 = vld [vmem:[#allocation9 + $0x14] sm:$0xf]
      %v598 = vld [vmem:[#allocation9 + $0x18] sm:$0xf]
      %v599 = vld [vmem:[#allocation9 + $0x1c] sm:$0xf]
      %v600 = vld [vmem:[#allocation9 + $0x20] sm:$0xf]
      %v601 = vld [vmem:[#allocation9 + $0x24] sm:$0xf]
      %v602 = vld [vmem:[#allocation9 + $0x28] sm:$0xf]
      %v603 = vld [vmem:[#allocation9 + $0x2c] sm:$0xf]
      %v604 = vld [vmem:[#allocation9 + $0x30] sm:$0xf]
      %v605 = vld [vmem:[#allocation9 + $0x34] sm:$0xf]
      %v606 = vld [vmem:[#allocation9 + $0x38] sm:$0xf]
      %v607 = vld [vmem:[#allocation9 + $0x3c] sm:$0xf]
      %v608 = vld [vmem:[%s5] sm:$0x1]
      %v610 = vlaneseq
      %v611 = vshrl.u32 %v610, 7
      %v612 = vsub.s32 0, %v611
      %v613 = vrot.slane %v608, %v612
      %v631 = vunpack.c.l.b16 %v592
      %v632 = vunpack.c.l.b16 %v593
      %v633 = vunpack.c.l.b16 %v594
      %v634 = vunpack.c.l.b16 %v595
      %v635 = vunpack.c.l.b16 %v596
      %v636 = vunpack.c.l.b16 %v597
      %v637 = vunpack.c.l.b16 %v598
      %v638 = vunpack.c.l.b16 %v599
      %v639 = vunpack.c.l.b16 %v600
      %v640 = vunpack.c.l.b16 %v601
      %v641 = vunpack.c.l.b16 %v602
      %v642 = vunpack.c.l.b16 %v603
      %v643 = vunpack.c.l.b16 %v604
      %v644 = vunpack.c.l.b16 %v605
      %v645 = vunpack.c.l.b16 %v606
      %v646 = vunpack.c.l.b16 %v607
      %v647 = vpack.c.b16 %v632, %v631
      %v648 = vpack.c.b16 %v634, %v633
      %v649 = vpack.c.b16 %v636, %v635
      %v650 = vpack.c.b16 %v638, %v637
      %v651 = vpack.c.b16 %v640, %v639
      %v652 = vpack.c.b16 %v642, %v641
      %v653 = vpack.c.b16 %v644, %v643
      %v654 = vpack.c.b16 %v646, %v645
      %663 = vmatprep.subr.bf16.mxu0 0
      %664 = vmatpush1.bf16.msra.mxu0 %v647
      %665 = vmatprep.subr.bf16.mxu0 0
      %666 = vmatpush1.bf16.msra.mxu0 %v648
      %667 = vmatprep.subr.bf16.mxu0 0
      %668 = vmatpush1.bf16.msra.mxu0 %v649
      %669 = vmatprep.subr.bf16.mxu0 0
      %670 = vmatpush1.bf16.msra.mxu0 %v650
      %671 = vmatprep.subr.bf16.mxu0 0
      %672 = vmatpush1.bf16.msra.mxu0 %v651
      %673 = vmatprep.subr.bf16.mxu0 0
      %674 = vmatpush1.bf16.msra.mxu0 %v652
      %675 = vmatprep.subr.bf16.mxu0 0
      %676 = vmatpush1.bf16.msra.mxu0 %v653
      %677 = vmatprep.subr.bf16.mxu0 0
      %678 = vmatpush1.bf16.msra.mxu0 %v654
      %679 = vmatprep.subr.bf16.mxu0 0
      %680 = vmatpush1.bf16.msra.mxu0 0
      %681 = vmatprep.subr.bf16.mxu0 0
      %682 = vmatpush1.bf16.msra.mxu0 0
      %683 = vmatprep.subr.bf16.mxu0 0
      %684 = vmatpush1.bf16.msra.mxu0 0
      %685 = vmatprep.subr.bf16.mxu0 0
      %686 = vmatpush1.bf16.msra.mxu0 0
      %687 = vmatprep.subr.bf16.mxu0 0
      %688 = vmatpush1.bf16.msra.mxu0 0
      %689 = vmatprep.subr.bf16.mxu0 0
      %690 = vmatpush1.bf16.msra.mxu0 0
      %691 = vmatprep.subr.bf16.mxu0 0
      %692 = vmatpush1.bf16.msra.mxu0 0
      %693 = vmatprep.subr.bf16.mxu0 0
      %694 = vmatpush1.bf16.msra.mxu0 0
      %695 = vmatprep.mubr.bf16.mxu0 0
      %696 = vmatmul.mubr.bf16.gmra.mrb[0].mxu0 %v584
      %v697 = vpop.f32.mrb[0].mxu0
      %v698 = vadd.f32 %v613, %v697
      %v699 = vpop.f32.mrb[0].mxu0
      %v700 = vpop.f32.mrb[0].mxu0
      %v701 = vadd.f32 %v613, %v700
      %v702 = vpop.f32.mrb[0].mxu0
      %703 = vmatprep.mubr.bf16.mxu0 0
      %704 = vmatmul.mubr.bf16.gmra.mrb[0].mxu0 %v585
      %v705 = vpop.f32.mrb[0].mxu0
      %v706 = vadd.f32 %v613, %v705
      %v707 = vpop.f32.mrb[0].mxu0
      %v708 = vpop.f32.mrb[0].mxu0
      %v709 = vadd.f32 %v613, %v708
      %v710 = vpop.f32.mrb[0].mxu0
      %711 = vmatprep.mubr.bf16.mxu0 0
      %712 = vmatmul.mubr.bf16.gmra.mrb[0].mxu0 %v586
      %v713 = vpop.f32.mrb[0].mxu0
      %v714 = vadd.f32 %v613, %v713
      %v715 = vpop.f32.mrb[0].mxu0
      %v716 = vpop.f32.mrb[0].mxu0
      %v717 = vadd.f32 %v613, %v716
      %v718 = vpop.f32.mrb[0].mxu0
      %719 = vmatprep.mubr.bf16.mxu0 0
      %720 = vmatmul.mubr.bf16.gmra.mrb[0].mxu0 %v587
      %v721 = vpop.f32.mrb[0].mxu0
      %v722 = vadd.f32 %v613, %v721
      %v723 = vpop.f32.mrb[0].mxu0
      %v724 = vpop.f32.mrb[0].mxu0
      %v725 = vadd.f32 %v613, %v724
      %v726 = vpop.f32.mrb[0].mxu0
      %727 = vmatprep.mubr.bf16.mxu0 0
      %728 = vmatmul.mubr.bf16.gmra.mrb[0].mxu0 %v588
      %v729 = vpop.f32.mrb[0].mxu0
      %v730 = vadd.f32 %v613, %v729
      %v731 = vpop.f32.mrb[0].mxu0
      %v732 = vpop.f32.mrb[0].mxu0
      %v733 = vadd.f32 %v613, %v732
      %v734 = vpop.f32.mrb[0].mxu0
      %735 = vmatprep.mubr.bf16.mxu0 0
      %736 = vmatmul.mubr.bf16.gmra.mrb[0].mxu0 %v589
      %v737 = vpop.f32.mrb[0].mxu0
      %v738 = vadd.f32 %v613, %v737
      %v739 = vpop.f32.mrb[0].mxu0
      %v740 = vpop.f32.mrb[0].mxu0
      %v741 = vadd.f32 %v613, %v740
      %v742 = vpop.f32.mrb[0].mxu0
      %743 = vmatprep.mubr.bf16.mxu0 0
      %744 = vmatmul.mubr.bf16.gmra.mrb[0].mxu0 %v590
      %v745 = vpop.f32.mrb[0].mxu0
      %v746 = vadd.f32 %v613, %v745
      %v747 = vpop.f32.mrb[0].mxu0
      %v748 = vpop.f32.mrb[0].mxu0
      %v749 = vadd.f32 %v613, %v748
      %v750 = vpop.f32.mrb[0].mxu0
      %751 = vmatprep.mubr.bf16.mxu0 0
      %752 = vmatmul.mubr.bf16.gmra.mrb[0].mxu0 %v591
      %v753 = vpop.f32.mrb[0].mxu0
      %v754 = vadd.f32 %v613, %v753
      %v755 = vpop.f32.mrb[0].mxu0
      %v756 = vpop.f32.mrb[0].mxu0
      %v757 = vadd.f32 %v613, %v756
      %v758 = vpop.f32.mrb[0].mxu0
      %759 = vdwg.mxu0
      %v760 = vmax.f32 %v698, 0.0
      %v761 = vmax.f32 %v701, 0.0
      %v762 = vmax.f32 %v706, 0.0
      %v763 = vmax.f32 %v709, 0.0
      %v764 = vmax.f32 %v714, 0.0
      %v765 = vmax.f32 %v717, 0.0
      %v766 = vmax.f32 %v722, 0.0
      %v767 = vmax.f32 %v725, 0.0
      %v768 = vmax.f32 %v730, 0.0
      %v769 = vmax.f32 %v733, 0.0
      %v770 = vmax.f32 %v738, 0.0
      %v771 = vmax.f32 %v741, 0.0
      %v772 = vmax.f32 %v746, 0.0
      %v773 = vmax.f32 %v749, 0.0
      %v774 = vmax.f32 %v754, 0.0
      %v775 = vmax.f32 %v757, 0.0
      %776 = vst [vmem:[#allocation11] sm:$0xff] %v760
      %777 = vst [vmem:[#allocation11 + $0x8] sm:$0xff] %v761
      %778 = vst [vmem:[#allocation11 + $0x10] sm:$0xff] %v762
      %779 = vst [vmem:[#allocation11 + $0x18] sm:$0xff] %v763
      %780 = vst [vmem:[#allocation11 + $0x20] sm:$0xff] %v764
      %781 = vst [vmem:[#allocation11 + $0x28] sm:$0xff] %v765
      %782 = vst [vmem:[#allocation11 + $0x30] sm:$0xff] %v766
      %783 = vst [vmem:[#allocation11 + $0x38] sm:$0xff] %v767
      %784 = vst [vmem:[#allocation11 + $0x40] sm:$0xff] %v768
      %785 = vst [vmem:[#allocation11 + $0x48] sm:$0xff] %v769
      %786 = vst [vmem:[#allocation11 + $0x50] sm:$0xff] %v770
      %787 = vst [vmem:[#allocation11 + $0x58] sm:$0xff] %v771
      %788 = vst [vmem:[#allocation11 + $0x60] sm:$0xff] %v772
      %789 = vst [vmem:[#allocation11 + $0x68] sm:$0xff] %v773
      %790 = vst [vmem:[#allocation11 + $0x70] sm:$0xff] %v774
      %791 = vst [vmem:[#allocation11 + $0x78] sm:$0xff] %v775
    $region49: #{tpu_custom_call.1} parent=1 // pred_fallthru
      _
    // Predicated region
    $region50: #{tpu_custom_call.1} parent=1 // pred_check
      _
    $region51: #{tpu_custom_call.1} parent=1 // pred_check_branch
      %793 = sbr.rel (0) target = $region53
    $region52: #{tpu_custom_call.1} parent=1 // pred_region
      %s795 = ssub.s32 2048, 2048
      %796 = vsyncadd [#allocation5], %s795
      %s797 = sshll.u32 [#allocation11], 4
      %s798 = int_to_ptr.vmem [resolvable:$true] %s797
      %803 = dma.vmem_to_hbm [thread:$0]  %s798, 2048, %s6, [#allocation5], 128, 128, 8
    $region53: #{tpu_custom_call.1} parent=1 // pred_fallthru
      _
    // Predicated region
    $region54: #{tpu_custom_call.1} parent=1 // pred_check
      _
    $region55: #{tpu_custom_call.1} parent=1 // pred_check_branch
      %805 = sbr.rel (0) target = $region57
    $region56: #{tpu_custom_call.1} parent=1 // pred_region
      %806 = dma.done [#allocation5], 2048
    $region57: #{tpu_custom_call.1} parent=1 // pred_fallthru
      _
    %807 = vsyncpa [#allocation4], 1
    %808 = vsyncpa [#allocation7], 1
    %809 = vsyncpa [#allocation10], 1
    %810 = vsyncpa [#allocation5], 1

</llo_original>
